<compile_context>
chip_gen: v5e
topology: v5e:2x2
jax: 0.10.0
libtpu: 0.0.40
codegen_flags: <defaults>
</compile_context>

<pallas_src>
import functools

import jax
import jax.numpy as jnp
from jax.experimental import pallas as pl
from jax.experimental.pallas import tpu as pltpu

_LANE = 128
_SUBLANE = 8


def _round_up(x, m):
    return ((x + m - 1) // m) * m


def _dqn_kernel(x_ref, w_enc_ref, w_gru_ref, w_dec_ref, bias_ref, h_prev_ref, out_ref):
    """Fused pooled-encoder -> single GRU step -> decoder.

    Static shapes:
      x_ref:      [Bp, C*H*W]        flattened NCHW feature map (pool folded into w_enc)
      w_enc_ref:  [C*H*W, E]         pool-folded encoder weight (already scaled 1/(H*W))
      w_gru_ref:  [E + Hp, 3*Hp]     row-stacked [W_ih.T ; W_hh.T], gate cols at 0/Hp/2Hp
      w_dec_ref:  [Hp, Kp]           decoder weight, zero-padded
      bias_ref:   [1, Ep + 4*Hp + Kp] packed (b_enc | b_ir+b_hr, b_iz+b_hz, b_in | b_hn | b_dec)
      h_prev_ref: [Bp, Hp]           previous hidden state, zero-padded lanes
      out_ref:    [Bp, Hp + Kp]      packed [h_new | q], lane-dense
    """
    E = w_enc_ref.shape[1]
    Hp = w_gru_ref.shape[1] // 3
    Kp = w_dec_ref.shape[1]
    Ep = _round_up(E, _LANE)
    off_bi = Ep
    off_bhn = Ep + 3 * Hp
    off_bdec = Ep + 4 * Hp

    # encoder (adaptive_avg_pool2d already folded into the weight):  [Bp, E]
    emb = (
        jnp.dot(x_ref[...], w_enc_ref[...], preferred_element_type=jnp.float32)
        + bias_ref[:, 0:E]
    )

    h = h_prev_ref[...]                                                  # [Bp, Hp]

    # Single GRU step (PyTorch gate order r, z, n); r/z hidden biases were
    # pre-folded into the input-bias slab, b_hn stays separate:
    #   r  = sigmoid(W_ir x + W_hr h + b_r)
    #   z  = sigmoid(W_iz x + W_hz h + b_z)
    #   n  = tanh  (W_in x + b_in + r * (W_hn h + b_hn))
    #   h' = (1 - z) * n + z * h
    gi = (
        jnp.dot(emb, w_gru_ref[0:E, :], preferred_element_type=jnp.float32)
        + bias_ref[:, off_bi:off_bi + 3 * Hp]
    )                                                                    # [Bp, 3Hp]
    gh = jnp.dot(h, w_gru_ref[E:E + Hp, :], preferred_element_type=jnp.float32)

    s = gi + gh                                                          # one wide VPU add
    r = jax.nn.sigmoid(s[:, 0:Hp])
    z = jax.nn.sigmoid(s[:, Hp:2 * Hp])
    n = jnp.tanh(
        gi[:, 2 * Hp:3 * Hp]
        + r * (gh[:, 2 * Hp:3 * Hp] + bias_ref[:, off_bhn:off_bhn + Hp])
    )
    h_new = (1.0 - z) * n + z * h                                        # [Bp, Hp]

    # decoder: [Bp, Kp]
    q = (
        jnp.dot(h_new, w_dec_ref[...], preferred_element_type=jnp.float32)
        + bias_ref[:, off_bdec:off_bdec + Kp]
    )

    # Single lane-dense (unmasked) store of the packed output slab.
    out_ref[...] = jnp.concatenate([h_new, q], axis=-1)


def prepare_params(raw_params, spatial_size, weight_dtype=jnp.float32):
    """One-time conversion of PyTorch-layout weights into kernel layout.

    Call ONCE after init / checkpoint load (not per step).

    Args:
      raw_params: dict of PyTorch-layout tensors (see init_dqn_params).
      spatial_size: H*W of the feature maps (int, or one int per encoder) —
        needed because the average pool is folded into the encoder weight.
      weight_dtype: storage dtype for matmul weights only (biases stay f32).
        jnp.bfloat16 is a valid option on v6e/v7x; keep f32 on v5e.
    """
    f32 = jnp.float32
    W_ih = jnp.asarray(raw_params["gru_w_ih"], f32)   # [3H, E]
    W_hh = jnp.asarray(raw_params["gru_w_hh"], f32)   # [3H, H]
    b_ih = jnp.asarray(raw_params["gru_b_ih"], f32)   # [3H]
    b_hh = jnp.asarray(raw_params["gru_b_hh"], f32)   # [3H]
    W_dec = jnp.asarray(raw_params["dec_w"], f32)     # [K, H]
    b_dec = jnp.asarray(raw_params["dec_b"], f32)     # [K]

    Hh = W_hh.shape[1]
    E = W_ih.shape[1]
    K = W_dec.shape[0]
    Hp = _round_up(Hh, _LANE)
    Ep = _round_up(E, _LANE)
    Kp = _round_up(K, _LANE)

    # --- GRU weight slab: rows [W_ih.T (E rows) ; W_hh.T (Hp rows)],
    #     gate column blocks at lane offsets 0 / Hp / 2*Hp, zero-padded.
    w_ih_t = jnp.zeros((E, 3 * Hp), f32)
    w_hh_t = jnp.zeros((Hp, 3 * Hp), f32)
    for g in range(3):
        w_ih_t = w_ih_t.at[:, g * Hp:g * Hp + Hh].set(W_ih[g * Hh:(g + 1) * Hh, :].T)
        w_hh_t = w_hh_t.at[:Hh, g * Hp:g * Hp + Hh].set(W_hh[g * Hh:(g + 1) * Hh, :].T)
    w_gru = jnp.concatenate([w_ih_t, w_hh_t], axis=0).astype(weight_dtype)

    # --- decoder weight, zero-padded to [Hp, Kp] so q is a full 128-lane tile.
    w_dec = jnp.zeros((Hp, Kp), f32).at[:Hh, :K].set(W_dec.T).astype(weight_dtype)

    # --- shared bias tail: (b_ir+b_hr | b_iz+b_hz | b_in) | b_hn | b_dec,
    #     each segment lane-aligned; r/z hidden biases folded into the input bias.
    bias_tail = jnp.zeros((4 * Hp + Kp,), f32)
    bias_tail = bias_tail.at[0 * Hp:0 * Hp + Hh].set(b_ih[0:Hh] + b_hh[0:Hh])
    bias_tail = bias_tail.at[1 * Hp:1 * Hp + Hh].set(b_ih[Hh:2 * Hh] + b_hh[Hh:2 * Hh])
    bias_tail = bias_tail.at[2 * Hp:2 * Hp + Hh].set(b_ih[2 * Hh:3 * Hh])
    bias_tail = bias_tail.at[3 * Hp:3 * Hp + Hh].set(b_hh[2 * Hh:3 * Hh])
    bias_tail = bias_tail.at[4 * Hp:4 * Hp + K].set(b_dec)

    # --- per-encoder: pool-folded weight + full bias slab (b_enc differs per encoder).
    n_enc = len(raw_params["encoders"])
    if isinstance(spatial_size, (list, tuple)):
        hw_list = [int(s) for s in spatial_size]
    else:
        hw_list = [int(spatial_size)] * n_enc
    assert len(hw_list) == n_enc

    encoders = []
    for (w_e, b_e), hw in zip(raw_params["encoders"], hw_list):
        w_e = jnp.asarray(w_e, f32)                   # [E, C] (PyTorch layout)
        b_e = jnp.asarray(b_e, f32)                   # [E]
        # mean pool folded in: each channel's row repeated hw times, scaled 1/hw.
        w_big = (jnp.repeat(w_e.T, hw, axis=0) / float(hw)).astype(weight_dtype)  # [C*hw, E]
        bias = jnp.zeros((1, Ep + 4 * Hp + Kp), f32)
        bias = bias.at[0, 0:E].set(b_e)
        bias = bias.at[0, Ep:].set(bias_tail)
        encoders.append((w_big, bias))

    arrays = {"encoders": encoders, "w_gru": w_gru, "w_dec": w_dec}
    meta = {"hidden_size": Hh, "num_actions": K, "embedding_size": E}
    return {"arrays": arrays, "meta": meta}


@functools.partial(jax.jit, static_argnames=("layer_idx", "hidden_size", "num_actions"))
def _dqn_forward_jit(feature_map, arrays, prev_rnn_hidden_state, *, layer_idx,
                     hidden_size, num_actions):
    B, C, H, W = feature_map.shape
    w_enc, bias = arrays["encoders"][layer_idx]
    w_gru, w_dec = arrays["w_gru"], arrays["w_dec"]

    chw = w_enc.shape[0]
    E = w_enc.shape[1]
    Hp = w_gru.shape[1] // 3
    Kp = w_dec.shape[1]
    assert chw == C * H * W, (
        f"encoder {layer_idx} was prepared for {chw} flattened features, "
        f"feature_map provides {C * H * W}")

    # Fill sublanes: pad batch to a multiple of 8 (callers should batch envs).
    Bp = _round_up(max(B, _SUBLANE), _SUBLANE)

    # Lane-dense flatten (free for a contiguous NCHW tensor) + batch pad.
    x = feature_map.reshape(B, chw).astype(jnp.float32)
    if Bp != B:
        x = jnp.pad(x, ((0, Bp - B), (0, 0)))

    h_prev = jnp.zeros((Bp, Hp), jnp.float32)
    if prev_rnn_hidden_state is not None:
        h0 = prev_rnn_hidden_state[0].astype(jnp.float32)           # [B, Hh]
        h_prev = h_prev.at[:B, :h0.shape[1]].set(h0)

    inputs = (x, w_enc, w_gru, w_dec, bias, h_prev)

    flops = 2 * Bp * (chw * E + E * 3 * Hp + Hp * 3 * Hp + Hp * Kp) + 12 * Bp * Hp
    bytes_accessed = 4 * (x.size + w_enc.size + w_gru.size + w_dec.size
                          + bias.size + h_prev.size + Bp * (Hp + Kp))

    vmem_spec = pl.BlockSpec(memory_space=pltpu.MemorySpace.VMEM)

    out = pl.pallas_call(
        _dqn_kernel,
        out_shape=jax.ShapeDtypeStruct((Bp, Hp + Kp), jnp.float32),
        in_specs=[vmem_spec] * len(inputs),
        out_specs=vmem_spec,
        cost_estimate=pl.CostEstimate(
            flops=flops,
            transcendentals=3 * Bp * Hp,
            bytes_accessed=bytes_accessed,
        ),
    )(*inputs)

    h_new = out[:B, :hidden_size]                 # real hidden columns
    q = out[:B, Hp:Hp + num_actions]              # real action columns
    return q, h_new[None]                         # new_hidden shaped [1, B, Hh]


def dqn_forward(feature_map, params, layer_idx, prev_rnn_hidden_state=None):
    """Pallas implementation of DQN.forward (params from prepare_params)."""
    meta = params["meta"]
    return _dqn_forward_jit(
        feature_map, params["arrays"], prev_rnn_hidden_state,
        layer_idx=layer_idx,
        hidden_size=meta["hidden_size"],
        num_actions=meta["num_actions"])


def init_dqn_params(key, layer_channels, embedding_size, rnn_hidden_size, num_actions):
    """Deterministic synthetic parameters with PyTorch weight layouts."""
    keys = jax.random.split(key, 8 + 2 * len(layer_channels))
    ki = iter(range(len(keys)))

    def w(k, shape, scale=0.1):
        return scale * jax.random.normal(keys[k], shape, dtype=jnp.float32)

    encoders = []
    for nc in layer_channels:
        encoders.append((w(next(ki), (embedding_size, nc)),      # weight [E, C]
                         w(next(ki), (embedding_size,))))        # bias   [E]

    return {
        "encoders": encoders,
        "gru_w_ih": w(next(ki), (3 * rnn_hidden_size, embedding_size)),
        "gru_w_hh": w(next(ki), (3 * rnn_hidden_size, rnn_hidden_size)),
        "gru_b_ih": w(next(ki), (3 * rnn_hidden_size,)),
        "gru_b_hh": w(next(ki), (3 * rnn_hidden_size,)),
        "dec_w": w(next(ki), (num_actions, rnn_hidden_size)),
        "dec_b": w(next(ki), (num_actions,)),
    }


def _reference_forward(feature_map, raw_params, layer_idx, prev_hidden):
    """Plain-JAX reference mirroring the PyTorch module (HIGHEST-precision matmuls)."""
    hi = jax.lax.Precision.HIGHEST
    pooled = jnp.mean(feature_map, axis=(2, 3))
    w_enc, b_enc = raw_params["encoders"][layer_idx]
    emb = jnp.dot(pooled, w_enc.T, precision=hi) + b_enc
    Hh = raw_params["gru_w_hh"].shape[1]
    h = (jnp.zeros((feature_map.shape[0], Hh), jnp.float32)
         if prev_hidden is None else prev_hidden[0])
    gi = jnp.dot(emb, raw_params["gru_w_ih"].T, precision=hi) + raw_params["gru_b_ih"]
    gh = jnp.dot(h, raw_params["gru_w_hh"].T, precision=hi) + raw_params["gru_b_hh"]
    i_r, i_z, i_n = gi[:, :Hh], gi[:, Hh:2 * Hh], gi[:, 2 * Hh:]
    h_r, h_z, h_n = gh[:, :Hh], gh[:, Hh:2 * Hh], gh[:, 2 * Hh:]
    r = jax.nn.sigmoid(i_r + h_r)
    z = jax.nn.sigmoid(i_z + h_z)
    n = jnp.tanh(i_n + r * h_n)
    h_new = (1.0 - z) * n + z * h
    q = jnp.dot(h_new, raw_params["dec_w"].T, precision=hi) + raw_params["dec_b"]
    return q, h_new[None]


if __name__ == "__main__":
    # Small shapes consistent with the module's forward.
    BATCH, CHANNELS, HEIGHT, WIDTH = 2, 4, 16, 16
    LAYER_CHANNELS = [4, 8]          # one encoder per CNN layer
    LAYER_IDX = 0                    # select encoder for the 4-channel feature map
    ENCODED_DIMS = 32
    RNN_HIDDEN_SIZE = 32
    NUM_ACTIONS = 8

    key = jax.random.PRNGKey(0)
    k_x, k_p = jax.random.split(key)

    feature_map = jax.random.normal(
        k_x, (BATCH, CHANNELS, HEIGHT, WIDTH), dtype=jnp.float32)
    raw_params = init_dqn_params(
        k_p, LAYER_CHANNELS, ENCODED_DIMS, RNN_HIDDEN_SIZE, NUM_ACTIONS)
    # One-time re-layout (pool folding needs the spatial size), outside the hot path.
    params = prepare_params(raw_params, spatial_size=HEIGHT * WIDTH)

    # Step 1: prev hidden state is None -> zeros.  Step 2: feed hidden state back.
    q1, h1 = dqn_forward(feature_map, params, LAYER_IDX, None)
    q2, h2 = dqn_forward(feature_map, params, LAYER_IDX, h1)
    jax.block_until_ready((q1, h1, q2, h2))

    assert q1.shape == (BATCH, NUM_ACTIONS)
    assert h1.shape == (1, BATCH, RNN_HIDDEN_SIZE)

    # Numerical check vs. plain-JAX reference using the raw PyTorch layouts.
    # Tolerance covers MXU pass-precision, EUP transcendentals and the
    # pool-fold accumulation-order change; structural bugs are orders larger.
    q1_ref, h1_ref = _reference_forward(feature_map, raw_params, LAYER_IDX, None)
    q2_ref, h2_ref = _reference_forward(feature_map, raw_params, LAYER_IDX, h1_ref)
    assert jnp.allclose(q1, q1_ref, atol=1e-3, rtol=1e-3), "q_values mismatch (step 1)"
    assert jnp.allclose(h1, h1_ref, atol=1e-3, rtol=1e-3), "hidden mismatch (step 1)"
    assert jnp.allclose(q2, q2_ref, atol=1e-3, rtol=1e-3), "q_values mismatch (step 2)"
    assert jnp.allclose(h2, h2_ref, atol=1e-3, rtol=1e-3), "hidden mismatch (step 2)"

    print("KERNEL_OK")
</pallas_src>

<mosaic_0001>
module attributes {stable_mosaic.version = 11 : i64} {
  func.func @_dqn_kernel(%arg0: memref<8x1024xf32, #tpu.memory_space<vmem>>, %arg1: memref<1024x32xf32, #tpu.memory_space<vmem>>, %arg2: memref<160x384xf32, #tpu.memory_space<vmem>>, %arg3: memref<128x128xf32, #tpu.memory_space<vmem>>, %arg4: memref<1x768xf32, #tpu.memory_space<vmem>>, %arg5: memref<8x128xf32, #tpu.memory_space<vmem>>, %arg6: memref<8x256xf32, #tpu.memory_space<vmem>>) attributes {dimension_semantics = [], scalar_prefetch = 0 : i64, scratch_operands = 0 : i64, tpu.core_type = #tpu.core_type<tc>} {
    %c0 = arith.constant 0 : index
    %c0_0 = arith.constant 0 : index
    %0 = vector.load %arg0[%c0, %c0_0] : memref<8x1024xf32, #tpu.memory_space<vmem>>, vector<8x1024xf32>
    %c0_1 = arith.constant 0 : index
    %c0_2 = arith.constant 0 : index
    %1 = vector.load %arg1[%c0_1, %c0_2] : memref<1024x32xf32, #tpu.memory_space<vmem>>, vector<1024x32xf32>
    %cst = arith.constant dense<0.000000e+00> : vector<8x32xf32>
    %2 = tpu.matmul %0, %1, %cst {dimension_numbers = #tpu.dot_dimension_numbers<[1], [0], [0], [1], [0, 0, 1, 1], [], []>} : vector<8x1024xf32>, vector<1024x32xf32>, vector<8x32xf32> -> vector<8x32xf32>
    %c0_3 = arith.constant 0 : index
    %c0_4 = arith.constant 0 : index
    %3 = vector.load %arg4[%c0_3, %c0_4] : memref<1x768xf32, #tpu.memory_space<vmem>>, vector<1x32xf32>
    %4 = vector.broadcast %3 : vector<1x32xf32> to vector<8x32xf32>
    %5 = arith.addf %2, %4 : vector<8x32xf32>
    %c0_5 = arith.constant 0 : index
    %c0_6 = arith.constant 0 : index
    %6 = vector.load %arg5[%c0_5, %c0_6] : memref<8x128xf32, #tpu.memory_space<vmem>>, vector<8x128xf32>
    %c0_7 = arith.constant 0 : index
    %c0_8 = arith.constant 0 : index
    %7 = vector.load %arg2[%c0_7, %c0_8] : memref<160x384xf32, #tpu.memory_space<vmem>>, vector<32x384xf32>
    %cst_9 = arith.constant dense<0.000000e+00> : vector<8x384xf32>
    %8 = tpu.matmul %5, %7, %cst_9 {dimension_numbers = #tpu.dot_dimension_numbers<[1], [0], [0], [1], [0, 0, 1, 1], [], []>} : vector<8x32xf32>, vector<32x384xf32>, vector<8x384xf32> -> vector<8x384xf32>
    %c0_10 = arith.constant 0 : index
    %c128 = arith.constant 128 : index
    %9 = vector.load %arg4[%c0_10, %c128] : memref<1x768xf32, #tpu.memory_space<vmem>>, vector<1x384xf32>
    %10 = vector.broadcast %9 : vector<1x384xf32> to vector<8x384xf32>
    %11 = arith.addf %8, %10 : vector<8x384xf32>
    %c32 = arith.constant 32 : index
    %c0_11 = arith.constant 0 : index
    %12 = vector.load %arg2[%c32, %c0_11] : memref<160x384xf32, #tpu.memory_space<vmem>>, vector<128x384xf32>
    %cst_12 = arith.constant dense<0.000000e+00> : vector<8x384xf32>
    %13 = tpu.matmul %6, %12, %cst_12 {dimension_numbers = #tpu.dot_dimension_numbers<[1], [0], [0], [1], [0, 0, 1, 1], [], []>} : vector<8x128xf32>, vector<128x384xf32>, vector<8x384xf32> -> vector<8x384xf32>
    %14 = arith.addf %11, %13 : vector<8x384xf32>
    %15 = vector.extract_strided_slice %14 {offsets = [0, 0], sizes = [8, 128], strides = [1, 1]} : vector<8x384xf32> to vector<8x128xf32>
    %16 = arith.negf %15 : vector<8x128xf32>
    %17 = math.exp %16 : vector<8x128xf32>
    %cst_13 = arith.constant 1.000000e+00 : f32
    %18 = vector.broadcast %cst_13 : f32 to vector<8x128xf32>
    %19 = arith.addf %18, %17 : vector<8x128xf32>
    %20 = arith.divf %18, %19 : vector<8x128xf32>
    %21 = vector.extract_strided_slice %14 {offsets = [0, 128], sizes = [8, 128], strides = [1, 1]} : vector<8x384xf32> to vector<8x128xf32>
    %22 = arith.negf %21 : vector<8x128xf32>
    %23 = math.exp %22 : vector<8x128xf32>
    %cst_14 = arith.constant 1.000000e+00 : f32
    %24 = vector.broadcast %cst_14 : f32 to vector<8x128xf32>
    %25 = arith.addf %24, %23 : vector<8x128xf32>
    %26 = arith.divf %24, %25 : vector<8x128xf32>
    %27 = vector.extract_strided_slice %11 {offsets = [0, 256], sizes = [8, 128], strides = [1, 1]} : vector<8x384xf32> to vector<8x128xf32>
    %28 = vector.extract_strided_slice %13 {offsets = [0, 256], sizes = [8, 128], strides = [1, 1]} : vector<8x384xf32> to vector<8x128xf32>
    %c0_15 = arith.constant 0 : index
    %c512 = arith.constant 512 : index
    %29 = vector.load %arg4[%c0_15, %c512] : memref<1x768xf32, #tpu.memory_space<vmem>>, vector<1x128xf32>
    %30 = vector.broadcast %29 : vector<1x128xf32> to vector<8x128xf32>
    %31 = arith.addf %28, %30 : vector<8x128xf32>
    %32 = arith.mulf %20, %31 : vector<8x128xf32>
    %33 = arith.addf %27, %32 : vector<8x128xf32>
    %34 = math.tanh %33 : vector<8x128xf32>
    %cst_16 = arith.constant 1.000000e+00 : f32
    %35 = vector.broadcast %cst_16 : f32 to vector<8x128xf32>
    %36 = arith.subf %35, %26 : vector<8x128xf32>
    %37 = arith.mulf %36, %34 : vector<8x128xf32>
    %38 = arith.mulf %26, %6 : vector<8x128xf32>
    %39 = arith.addf %37, %38 : vector<8x128xf32>
    %c0_17 = arith.constant 0 : index
    %c0_18 = arith.constant 0 : index
    %40 = vector.load %arg3[%c0_17, %c0_18] : memref<128x128xf32, #tpu.memory_space<vmem>>, vector<128x128xf32>
    %cst_19 = arith.constant dense<0.000000e+00> : vector<8x128xf32>
    %41 = tpu.matmul %39, %40, %cst_19 {dimension_numbers = #tpu.dot_dimension_numbers<[1], [0], [0], [1], [0, 0, 1, 1], [], []>} : vector<8x128xf32>, vector<128x128xf32>, vector<8x128xf32> -> vector<8x128xf32>
    %c0_20 = arith.constant 0 : index
    %c640 = arith.constant 640 : index
    %42 = vector.load %arg4[%c0_20, %c640] : memref<1x768xf32, #tpu.memory_space<vmem>>, vector<1x128xf32>
    %43 = vector.broadcast %42 : vector<1x128xf32> to vector<8x128xf32>
    %44 = arith.addf %41, %43 : vector<8x128xf32>
    %45 = tpu.concatenate %39, %44 in 1 : vector<8x128xf32>, vector<8x128xf32> -> vector<8x256xf32>
    %c0_21 = arith.constant 0 : index
    %c0_22 = arith.constant 0 : index
    %46 = vector.load %arg6[%c0_21, %c0_22] : memref<8x256xf32, #tpu.memory_space<vmem>>, vector<8x256xf32>
    tpu.vector_store %arg6[%c0_21, %c0_22], %45 {strides = array<i32>} : memref<8x256xf32, #tpu.memory_space<vmem>>, vector<8x256xf32>,
    return
  }
}

</mosaic_0001>

<llo_original>
// kernel: _dqn_forward_jit.1
$region0: #{_dqn_forward_jit.1}
  #allocation0 [shape = 'u32[]', space=smem, size = 0x4, offset = 0x4, fixed_abs, tag = 'smem constant byte address 0x4 - core index']
  #allocation1 [shape = 'u32[72,128]{1,0:T(1,128)}', space=vmem, size = 0x9000, scoped, tag = 'internal scratch']
  %s0 = inlined_call_operand.vmem [shape: f32[8,1024], index: 0, kind: input, shape index: {}]
  %s1 = inlined_call_operand.vmem [shape: f32[1024,32], index: 1, kind: input, shape index: {}]
  %s2 = inlined_call_operand.vmem [shape: f32[160,384], index: 2, kind: input, shape index: {}]
  %s3 = inlined_call_operand.vmem [shape: f32[128,128], index: 3, kind: input, shape index: {}]
  %s4 = inlined_call_operand.vmem [shape: f32[1,768], index: 4, kind: input, shape index: {}]
  %s5 = inlined_call_operand.vmem [shape: f32[8,128], index: 5, kind: input, shape index: {}]
  %s6 = inlined_call_operand.vmem [shape: f32[8,256], index: 6, kind: output, shape index: {}]
  %s7 = sld [smem:[#allocation0]]
  $region34: #{_dqn_forward_jit.1} parent=0
    _
  %s9 = ssub.s32 1, %s7
  %s10 = scalar_select 0, %s9, %s7
  // Predicated region
  $region2: #{_dqn_forward_jit.1} parent=0 // pred_check
    _
  $region3: #{_dqn_forward_jit.1} parent=0 // pred_check_branch
    %12 = sbr.rel (0) target = $region5
  $region4: #{_dqn_forward_jit.1} parent=0 // pred_region
    _
  $region5: #{_dqn_forward_jit.1} parent=0 // pred_fallthru
    _
  // Predicated region
  $region6: #{_dqn_forward_jit.1} parent=0 // pred_check
    _
  $region7: #{_dqn_forward_jit.1} parent=0 // pred_check_branch
    %14 = sbr.rel (0) target = $region9
  $region8: #{_dqn_forward_jit.1} parent=0 // pred_region
    _
  $region9: #{_dqn_forward_jit.1} parent=0 // pred_fallthru
    _
  // Predicated region
  $region10: #{_dqn_forward_jit.1} parent=0 // pred_check
    _
  $region11: #{_dqn_forward_jit.1} parent=0 // pred_check_branch
    %16 = sbr.rel (0) target = $region13
  $region12: #{_dqn_forward_jit.1} parent=0 // pred_region
    _
  $region13: #{_dqn_forward_jit.1} parent=0 // pred_fallthru
    _
  // Predicated region
  $region14: #{_dqn_forward_jit.1} parent=0 // pred_check
    _
  $region15: #{_dqn_forward_jit.1} parent=0 // pred_check_branch
    %18 = sbr.rel (0) target = $region17
  $region16: #{_dqn_forward_jit.1} parent=0 // pred_region
    _
  $region17: #{_dqn_forward_jit.1} parent=0 // pred_fallthru
    _
  // Predicated region
  $region18: #{_dqn_forward_jit.1} parent=0 // pred_check
    _
  $region19: #{_dqn_forward_jit.1} parent=0 // pred_check_branch
    %20 = sbr.rel (0) target = $region21
  $region20: #{_dqn_forward_jit.1} parent=0 // pred_region
    _
  $region21: #{_dqn_forward_jit.1} parent=0 // pred_fallthru
    _
  // Predicated region
  $region22: #{_dqn_forward_jit.1} parent=0 // pred_check
    _
  $region23: #{_dqn_forward_jit.1} parent=0 // pred_check_branch
    %22 = sbr.rel (0) target = $region25
  $region24: #{_dqn_forward_jit.1} parent=0 // pred_region
    _
  $region25: #{_dqn_forward_jit.1} parent=0 // pred_fallthru
    _
  %v23 = vld [vmem:[%s0] sm:$0xff]
  %v24 = vld [vmem:[%s0 + $0x8] sm:$0xff]
  %v25 = vld [vmem:[%s0 + $0x10] sm:$0xff]
  %v26 = vld [vmem:[%s0 + $0x18] sm:$0xff]
  %v27 = vld [vmem:[%s0 + $0x20] sm:$0xff]
  %v28 = vld [vmem:[%s0 + $0x28] sm:$0xff]
  %v29 = vld [vmem:[%s0 + $0x30] sm:$0xff]
  %v30 = vld [vmem:[%s0 + $0x38] sm:$0xff]
  %v31 = vld [vmem:[%s1] sm:$0xff]
  %v32 = vld [vmem:[%s1 + $0x8] sm:$0xff]
  %v33 = vld [vmem:[%s1 + $0x10] sm:$0xff]
  %v34 = vld [vmem:[%s1 + $0x18] sm:$0xff]
  %v35 = vld [vmem:[%s1 + $0x20] sm:$0xff]
  %v36 = vld [vmem:[%s1 + $0x28] sm:$0xff]
  %v37 = vld [vmem:[%s1 + $0x30] sm:$0xff]
  %v38 = vld [vmem:[%s1 + $0x38] sm:$0xff]
  %v39 = vld [vmem:[%s1 + $0x40] sm:$0xff]
  %v40 = vld [vmem:[%s1 + $0x48] sm:$0xff]
  %v41 = vld [vmem:[%s1 + $0x50] sm:$0xff]
  %v42 = vld [vmem:[%s1 + $0x58] sm:$0xff]
  %v43 = vld [vmem:[%s1 + $0x60] sm:$0xff]
  %v44 = vld [vmem:[%s1 + $0x68] sm:$0xff]
  %v45 = vld [vmem:[%s1 + $0x70] sm:$0xff]
  %v46 = vld [vmem:[%s1 + $0x78] sm:$0xff]
  %v47 = vld [vmem:[%s1 + $0x80] sm:$0xff]
  %v48 = vld [vmem:[%s1 + $0x88] sm:$0xff]
  %v49 = vld [vmem:[%s1 + $0x90] sm:$0xff]
  %v50 = vld [vmem:[%s1 + $0x98] sm:$0xff]
  %v51 = vld [vmem:[%s1 + $0xa0] sm:$0xff]
  %v52 = vld [vmem:[%s1 + $0xa8] sm:$0xff]
  %v53 = vld [vmem:[%s1 + $0xb0] sm:$0xff]
  %v54 = vld [vmem:[%s1 + $0xb8] sm:$0xff]
  %v55 = vld [vmem:[%s1 + $0xc0] sm:$0xff]
  %v56 = vld [vmem:[%s1 + $0xc8] sm:$0xff]
  %v57 = vld [vmem:[%s1 + $0xd0] sm:$0xff]
  %v58 = vld [vmem:[%s1 + $0xd8] sm:$0xff]
  %v59 = vld [vmem:[%s1 + $0xe0] sm:$0xff]
  %v60 = vld [vmem:[%s1 + $0xe8] sm:$0xff]
  %v61 = vld [vmem:[%s1 + $0xf0] sm:$0xff]
  %v62 = vld [vmem:[%s1 + $0xf8] sm:$0xff]
  %v63 = vld [vmem:[%s1 + $0x100] sm:$0xff]
  %v64 = vld [vmem:[%s1 + $0x108] sm:$0xff]
  %v65 = vld [vmem:[%s1 + $0x110] sm:$0xff]
  %v66 = vld [vmem:[%s1 + $0x118] sm:$0xff]
  %v67 = vld [vmem:[%s1 + $0x120] sm:$0xff]
  %v68 = vld [vmem:[%s1 + $0x128] sm:$0xff]
  %v69 = vld [vmem:[%s1 + $0x130] sm:$0xff]
  %v70 = vld [vmem:[%s1 + $0x138] sm:$0xff]
  %v71 = vld [vmem:[%s1 + $0x140] sm:$0xff]
  %v72 = vld [vmem:[%s1 + $0x148] sm:$0xff]
  %v73 = vld [vmem:[%s1 + $0x150] sm:$0xff]
  %v74 = vld [vmem:[%s1 + $0x158] sm:$0xff]
  %v75 = vld [vmem:[%s1 + $0x160] sm:$0xff]
  %v76 = vld [vmem:[%s1 + $0x168] sm:$0xff]
  %v77 = vld [vmem:[%s1 + $0x170] sm:$0xff]
  %v78 = vld [vmem:[%s1 + $0x178] sm:$0xff]
  %v79 = vld [vmem:[%s1 + $0x180] sm:$0xff]
  %v80 = vld [vmem:[%s1 + $0x188] sm:$0xff]
  %v81 = vld [vmem:[%s1 + $0x190] sm:$0xff]
  %v82 = vld [vmem:[%s1 + $0x198] sm:$0xff]
  %v83 = vld [vmem:[%s1 + $0x1a0] sm:$0xff]
  %v84 = vld [vmem:[%s1 + $0x1a8] sm:$0xff]
  %v85 = vld [vmem:[%s1 + $0x1b0] sm:$0xff]
  %v86 = vld [vmem:[%s1 + $0x1b8] sm:$0xff]
  %v87 = vld [vmem:[%s1 + $0x1c0] sm:$0xff]
  %v88 = vld [vmem:[%s1 + $0x1c8] sm:$0xff]
  %v89 = vld [vmem:[%s1 + $0x1d0] sm:$0xff]
  %v90 = vld [vmem:[%s1 + $0x1d8] sm:$0xff]
  %v91 = vld [vmem:[%s1 + $0x1e0] sm:$0xff]
  %v92 = vld [vmem:[%s1 + $0x1e8] sm:$0xff]
  %v93 = vld [vmem:[%s1 + $0x1f0] sm:$0xff]
  %v94 = vld [vmem:[%s1 + $0x1f8] sm:$0xff]
  %v95 = vld [vmem:[%s1 + $0x200] sm:$0xff]
  %v96 = vld [vmem:[%s1 + $0x208] sm:$0xff]
  %v97 = vld [vmem:[%s1 + $0x210] sm:$0xff]
  %v98 = vld [vmem:[%s1 + $0x218] sm:$0xff]
  %v99 = vld [vmem:[%s1 + $0x220] sm:$0xff]
  %v100 = vld [vmem:[%s1 + $0x228] sm:$0xff]
  %v101 = vld [vmem:[%s1 + $0x230] sm:$0xff]
  %v102 = vld [vmem:[%s1 + $0x238] sm:$0xff]
  %v103 = vld [vmem:[%s1 + $0x240] sm:$0xff]
  %v104 = vld [vmem:[%s1 + $0x248] sm:$0xff]
  %v105 = vld [vmem:[%s1 + $0x250] sm:$0xff]
  %v106 = vld [vmem:[%s1 + $0x258] sm:$0xff]
  %v107 = vld [vmem:[%s1 + $0x260] sm:$0xff]
  %v108 = vld [vmem:[%s1 + $0x268] sm:$0xff]
  %v109 = vld [vmem:[%s1 + $0x270] sm:$0xff]
  %v110 = vld [vmem:[%s1 + $0x278] sm:$0xff]
  %v111 = vld [vmem:[%s1 + $0x280] sm:$0xff]
  %v112 = vld [vmem:[%s1 + $0x288] sm:$0xff]
  %v113 = vld [vmem:[%s1 + $0x290] sm:$0xff]
  %v114 = vld [vmem:[%s1 + $0x298] sm:$0xff]
  %v115 = vld [vmem:[%s1 + $0x2a0] sm:$0xff]
  %v116 = vld [vmem:[%s1 + $0x2a8] sm:$0xff]
  %v117 = vld [vmem:[%s1 + $0x2b0] sm:$0xff]
  %v118 = vld [vmem:[%s1 + $0x2b8] sm:$0xff]
  %v119 = vld [vmem:[%s1 + $0x2c0] sm:$0xff]
  %v120 = vld [vmem:[%s1 + $0x2c8] sm:$0xff]
  %v121 = vld [vmem:[%s1 + $0x2d0] sm:$0xff]
  %v122 = vld [vmem:[%s1 + $0x2d8] sm:$0xff]
  %v123 = vld [vmem:[%s1 + $0x2e0] sm:$0xff]
  %v124 = vld [vmem:[%s1 + $0x2e8] sm:$0xff]
  %v125 = vld [vmem:[%s1 + $0x2f0] sm:$0xff]
  %v126 = vld [vmem:[%s1 + $0x2f8] sm:$0xff]
  %v127 = vld [vmem:[%s1 + $0x300] sm:$0xff]
  %v128 = vld [vmem:[%s1 + $0x308] sm:$0xff]
  %v129 = vld [vmem:[%s1 + $0x310] sm:$0xff]
  %v130 = vld [vmem:[%s1 + $0x318] sm:$0xff]
  %v131 = vld [vmem:[%s1 + $0x320] sm:$0xff]
  %v132 = vld [vmem:[%s1 + $0x328] sm:$0xff]
  %v133 = vld [vmem:[%s1 + $0x330] sm:$0xff]
  %v134 = vld [vmem:[%s1 + $0x338] sm:$0xff]
  %v135 = vld [vmem:[%s1 + $0x340] sm:$0xff]
  %v136 = vld [vmem:[%s1 + $0x348] sm:$0xff]
  %v137 = vld [vmem:[%s1 + $0x350] sm:$0xff]
  %v138 = vld [vmem:[%s1 + $0x358] sm:$0xff]
  %v139 = vld [vmem:[%s1 + $0x360] sm:$0xff]
  %v140 = vld [vmem:[%s1 + $0x368] sm:$0xff]
  %v141 = vld [vmem:[%s1 + $0x370] sm:$0xff]
  %v142 = vld [vmem:[%s1 + $0x378] sm:$0xff]
  %v143 = vld [vmem:[%s1 + $0x380] sm:$0xff]
  %v144 = vld [vmem:[%s1 + $0x388] sm:$0xff]
  %v145 = vld [vmem:[%s1 + $0x390] sm:$0xff]
  %v146 = vld [vmem:[%s1 + $0x398] sm:$0xff]
  %v147 = vld [vmem:[%s1 + $0x3a0] sm:$0xff]
  %v148 = vld [vmem:[%s1 + $0x3a8] sm:$0xff]
  %v149 = vld [vmem:[%s1 + $0x3b0] sm:$0xff]
  %v150 = vld [vmem:[%s1 + $0x3b8] sm:$0xff]
  %v151 = vld [vmem:[%s1 + $0x3c0] sm:$0xff]
  %v152 = vld [vmem:[%s1 + $0x3c8] sm:$0xff]
  %v153 = vld [vmem:[%s1 + $0x3d0] sm:$0xff]
  %v154 = vld [vmem:[%s1 + $0x3d8] sm:$0xff]
  %v155 = vld [vmem:[%s1 + $0x3e0] sm:$0xff]
  %v156 = vld [vmem:[%s1 + $0x3e8] sm:$0xff]
  %v157 = vld [vmem:[%s1 + $0x3f0] sm:$0xff]
  %v158 = vld [vmem:[%s1 + $0x3f8] sm:$0xff]
  %v159 = vld [vmem:[%s4] sm:$0x1]
  %v161 = vperm.slane %v159, 0
  %163 = vmatpush.msra.mxu0 %v46
  %164 = vmatpush.msra.mxu0 %v45
  %165 = vmatpush.msra.mxu0 %v44
  %166 = vmatpush.msra.mxu0 %v43
  %167 = vmatpush.msra.mxu0 %v42
  %168 = vmatpush.msra.mxu0 %v41
  %169 = vmatpush.msra.mxu0 %v40
  %170 = vmatpush.msra.mxu0 %v39
  %171 = vmatpush.msra.mxu0 %v38
  %172 = vmatpush.msra.mxu0 %v37
  %173 = vmatpush.msra.mxu0 %v36
  %174 = vmatpush.msra.mxu0 %v35
  %175 = vmatpush.msra.mxu0 %v34
  %176 = vmatpush.msra.mxu0 %v33
  %177 = vmatpush.msra.mxu0 %v32
  %178 = vmatpush.msra.mxu0 %v31
  %179 = vmatmul.f32.gmra.mxu0 %v23
  %v180 = vpop.f32.mrf.mxu0
  %v181 = vadd.f32 %v161, %v180
  %182 = vdwg.mxu0
  %183 = vmatpush.msra.mxu0 %v62
  %184 = vmatpush.msra.mxu0 %v61
  %185 = vmatpush.msra.mxu0 %v60
  %186 = vmatpush.msra.mxu0 %v59
  %187 = vmatpush.msra.mxu0 %v58
  %188 = vmatpush.msra.mxu0 %v57
  %189 = vmatpush.msra.mxu0 %v56
  %190 = vmatpush.msra.mxu0 %v55
  %191 = vmatpush.msra.mxu0 %v54
  %192 = vmatpush.msra.mxu0 %v53
  %193 = vmatpush.msra.mxu0 %v52
  %194 = vmatpush.msra.mxu0 %v51
  %195 = vmatpush.msra.mxu0 %v50
  %196 = vmatpush.msra.mxu0 %v49
  %197 = vmatpush.msra.mxu0 %v48
  %198 = vmatpush.msra.mxu0 %v47
  %199 = vmatmul.f32.gmra.mxu0 %v24
  %v200 = vpop.f32.mrf.mxu0
  %v201 = vadd.f32 %v181, %v200
  %202 = vdwg.mxu0
  %203 = vmatpush.msra.mxu0 %v78
  %204 = vmatpush.msra.mxu0 %v77
  %205 = vmatpush.msra.mxu0 %v76
  %206 = vmatpush.msra.mxu0 %v75
  %207 = vmatpush.msra.mxu0 %v74
  %208 = vmatpush.msra.mxu0 %v73
  %209 = vmatpush.msra.mxu0 %v72
  %210 = vmatpush.msra.mxu0 %v71
  %211 = vmatpush.msra.mxu0 %v70
  %212 = vmatpush.msra.mxu0 %v69
  %213 = vmatpush.msra.mxu0 %v68
  %214 = vmatpush.msra.mxu0 %v67
  %215 = vmatpush.msra.mxu0 %v66
  %216 = vmatpush.msra.mxu0 %v65
  %217 = vmatpush.msra.mxu0 %v64
  %218 = vmatpush.msra.mxu0 %v63
  %219 = vmatmul.f32.gmra.mxu0 %v25
  %v220 = vpop.f32.mrf.mxu0
  %v221 = vadd.f32 %v201, %v220
  %222 = vdwg.mxu0
  %223 = vmatpush.msra.mxu0 %v94
  %224 = vmatpush.msra.mxu0 %v93
  %225 = vmatpush.msra.mxu0 %v92
  %226 = vmatpush.msra.mxu0 %v91
  %227 = vmatpush.msra.mxu0 %v90
  %228 = vmatpush.msra.mxu0 %v89
  %229 = vmatpush.msra.mxu0 %v88
  %230 = vmatpush.msra.mxu0 %v87
  %231 = vmatpush.msra.mxu0 %v86
  %232 = vmatpush.msra.mxu0 %v85
  %233 = vmatpush.msra.mxu0 %v84
  %234 = vmatpush.msra.mxu0 %v83
  %235 = vmatpush.msra.mxu0 %v82
  %236 = vmatpush.msra.mxu0 %v81
  %237 = vmatpush.msra.mxu0 %v80
  %238 = vmatpush.msra.mxu0 %v79
  %239 = vmatmul.f32.gmra.mxu0 %v26
  %v240 = vpop.f32.mrf.mxu0
  %v241 = vadd.f32 %v221, %v240
  %242 = vdwg.mxu0
  %243 = vmatpush.msra.mxu0 %v110
  %244 = vmatpush.msra.mxu0 %v109
  %245 = vmatpush.msra.mxu0 %v108
  %246 = vmatpush.msra.mxu0 %v107
  %247 = vmatpush.msra.mxu0 %v106
  %248 = vmatpush.msra.mxu0 %v105
  %249 = vmatpush.msra.mxu0 %v104
  %250 = vmatpush.msra.mxu0 %v103
  %251 = vmatpush.msra.mxu0 %v102
  %252 = vmatpush.msra.mxu0 %v101
  %253 = vmatpush.msra.mxu0 %v100
  %254 = vmatpush.msra.mxu0 %v99
  %255 = vmatpush.msra.mxu0 %v98
  %256 = vmatpush.msra.mxu0 %v97
  %257 = vmatpush.msra.mxu0 %v96
  %258 = vmatpush.msra.mxu0 %v95
  %259 = vmatmul.f32.gmra.mxu0 %v27
  %v260 = vpop.f32.mrf.mxu0
  %v261 = vadd.f32 %v241, %v260
  %262 = vdwg.mxu0
  %263 = vmatpush.msra.mxu0 %v126
  %264 = vmatpush.msra.mxu0 %v125
  %265 = vmatpush.msra.mxu0 %v124
  %266 = vmatpush.msra.mxu0 %v123
  %267 = vmatpush.msra.mxu0 %v122
  %268 = vmatpush.msra.mxu0 %v121
  %269 = vmatpush.msra.mxu0 %v120
  %270 = vmatpush.msra.mxu0 %v119
  %271 = vmatpush.msra.mxu0 %v118
  %272 = vmatpush.msra.mxu0 %v117
  %273 = vmatpush.msra.mxu0 %v116
  %274 = vmatpush.msra.mxu0 %v115
  %275 = vmatpush.msra.mxu0 %v114
  %276 = vmatpush.msra.mxu0 %v113
  %277 = vmatpush.msra.mxu0 %v112
  %278 = vmatpush.msra.mxu0 %v111
  %279 = vmatmul.f32.gmra.mxu0 %v28
  %v280 = vpop.f32.mrf.mxu0
  %v281 = vadd.f32 %v261, %v280
  %282 = vdwg.mxu0
  %283 = vmatpush.msra.mxu0 %v142
  %284 = vmatpush.msra.mxu0 %v141
  %285 = vmatpush.msra.mxu0 %v140
  %286 = vmatpush.msra.mxu0 %v139
  %287 = vmatpush.msra.mxu0 %v138
  %288 = vmatpush.msra.mxu0 %v137
  %289 = vmatpush.msra.mxu0 %v136
  %290 = vmatpush.msra.mxu0 %v135
  %291 = vmatpush.msra.mxu0 %v134
  %292 = vmatpush.msra.mxu0 %v133
  %293 = vmatpush.msra.mxu0 %v132
  %294 = vmatpush.msra.mxu0 %v131
  %295 = vmatpush.msra.mxu0 %v130
  %296 = vmatpush.msra.mxu0 %v129
  %297 = vmatpush.msra.mxu0 %v128
  %298 = vmatpush.msra.mxu0 %v127
  %299 = vmatmul.f32.gmra.mxu0 %v29
  %v300 = vpop.f32.mrf.mxu0
  %v301 = vadd.f32 %v281, %v300
  %302 = vdwg.mxu0
  %303 = vmatpush.msra.mxu0 %v158
  %304 = vmatpush.msra.mxu0 %v157
  %305 = vmatpush.msra.mxu0 %v156
  %306 = vmatpush.msra.mxu0 %v155
  %307 = vmatpush.msra.mxu0 %v154
  %308 = vmatpush.msra.mxu0 %v153
  %309 = vmatpush.msra.mxu0 %v152
  %310 = vmatpush.msra.mxu0 %v151
  %311 = vmatpush.msra.mxu0 %v150
  %312 = vmatpush.msra.mxu0 %v149
  %313 = vmatpush.msra.mxu0 %v148
  %314 = vmatpush.msra.mxu0 %v147
  %315 = vmatpush.msra.mxu0 %v146
  %316 = vmatpush.msra.mxu0 %v145
  %317 = vmatpush.msra.mxu0 %v144
  %318 = vmatpush.msra.mxu0 %v143
  %319 = vmatmul.f32.gmra.mxu0 %v30
  %v320 = vpop.f32.mrf.mxu0
  %v321 = vadd.f32 %v301, %v320
  %322 = vdwg.mxu0
  %v323 = vld [vmem:[%s5] sm:$0xff]
  %v324 = vld [vmem:[%s2] sm:$0xff]
  %v325 = vld [vmem:[%s2 + $0x8] sm:$0xff]
  %v326 = vld [vmem:[%s2 + $0x10] sm:$0xff]
  %v327 = vld [vmem:[%s2 + $0x18] sm:$0xff]
  %v328 = vld [vmem:[%s2 + $0x20] sm:$0xff]
  %v329 = vld [vmem:[%s2 + $0x28] sm:$0xff]
  %v330 = vld [vmem:[%s2 + $0x30] sm:$0xff]
  %v331 = vld [vmem:[%s2 + $0x38] sm:$0xff]
  %v332 = vld [vmem:[%s2 + $0x40] sm:$0xff]
  %v333 = vld [vmem:[%s2 + $0x48] sm:$0xff]
  %v334 = vld [vmem:[%s2 + $0x50] sm:$0xff]
  %v335 = vld [vmem:[%s2 + $0x58] sm:$0xff]
  %v336 = vld [vmem:[%s4 + $0x1] sm:$0x7]
  %v338 = vperm.slane %v336, 0
  %v339 = vperm.slane %v336, 1
  %v340 = vperm.slane %v336, 2
  %vm344 = vcmask 261120
  %v346 = vsel %vm344, %v321, 0
  %348 = vmatpush.msra.mxu0 0.0
  %349 = vmatpush.msra.mxu0 0.0
  %350 = vmatpush.msra.mxu0 0.0
  %351 = vmatpush.msra.mxu0 0.0
  %352 = vmatpush.msra.mxu0 0.0
  %353 = vmatpush.msra.mxu0 0.0
  %354 = vmatpush.msra.mxu0 0.0
  %355 = vmatpush.msra.mxu0 0.0
  %356 = vmatpush.msra.mxu0 0.0
  %357 = vmatpush.msra.mxu0 0.0
  %358 = vmatpush.msra.mxu0 0.0
  %359 = vmatpush.msra.mxu0 0.0
  %360 = vmatpush.msra.mxu0 %v333
  %361 = vmatpush.msra.mxu0 %v330
  %362 = vmatpush.msra.mxu0 %v327
  %363 = vmatpush.msra.mxu0 %v324
  %364 = vmatmul.f32.gmra.mxu0 %v346
  %v365 = vpop.f32.mrf.mxu0
  %v366 = vadd.f32 %v338, %v365
  %367 = vdwg.mxu0
  %368 = vmatpush.msra.mxu0 0.0
  %369 = vmatpush.msra.mxu0 0.0
  %370 = vmatpush.msra.mxu0 0.0
  %371 = vmatpush.msra.mxu0 0.0
  %372 = vmatpush.msra.mxu0 0.0
  %373 = vmatpush.msra.mxu0 0.0
  %374 = vmatpush.msra.mxu0 0.0
  %375 = vmatpush.msra.mxu0 0.0
  %376 = vmatpush.msra.mxu0 0.0
  %377 = vmatpush.msra.mxu0 0.0
  %378 = vmatpush.msra.mxu0 0.0
  %379 = vmatpush.msra.mxu0 0.0
  %380 = vmatpush.msra.mxu0 %v334
  %381 = vmatpush.msra.mxu0 %v331
  %382 = vmatpush.msra.mxu0 %v328
  %383 = vmatpush.msra.mxu0 %v325
  %384 = vmatmul.f32.gmra.mxu0 %v346
  %v385 = vpop.f32.mrf.mxu0
  %v386 = vadd.f32 %v339, %v385
  %387 = vdwg.mxu0
  %388 = vmatpush.msra.mxu0 0.0
  %389 = vmatpush.msra.mxu0 0.0
  %390 = vmatpush.msra.mxu0 0.0
  %391 = vmatpush.msra.mxu0 0.0
  %392 = vmatpush.msra.mxu0 0.0
  %393 = vmatpush.msra.mxu0 0.0
  %394 = vmatpush.msra.mxu0 0.0
  %395 = vmatpush.msra.mxu0 0.0
  %396 = vmatpush.msra.mxu0 0.0
  %397 = vmatpush.msra.mxu0 0.0
  %398 = vmatpush.msra.mxu0 0.0
  %399 = vmatpush.msra.mxu0 0.0
  %400 = vmatpush.msra.mxu0 %v335
  %401 = vmatpush.msra.mxu0 %v332
  %402 = vmatpush.msra.mxu0 %v329
  %403 = vmatpush.msra.mxu0 %v326
  %404 = vmatmul.f32.gmra.mxu0 %v346
  %v405 = vpop.f32.mrf.mxu0
  %v406 = vadd.f32 %v340, %v405
  %407 = vdwg.mxu0
  %v408 = vld [vmem:[%s2 + $0x60] sm:$0xff]
  %v409 = vld [vmem:[%s2 + $0x68] sm:$0xff]
  %v410 = vld [vmem:[%s2 + $0x70] sm:$0xff]
  %v411 = vld [vmem:[%s2 + $0x78] sm:$0xff]
  %v412 = vld [vmem:[%s2 + $0x80] sm:$0xff]
  %v413 = vld [vmem:[%s2 + $0x88] sm:$0xff]
  %v414 = vld [vmem:[%s2 + $0x90] sm:$0xff]
  %v415 = vld [vmem:[%s2 + $0x98] sm:$0xff]
  %v416 = vld [vmem:[%s2 + $0xa0] sm:$0xff]
  %v417 = vld [vmem:[%s2 + $0xa8] sm:$0xff]
  %v418 = vld [vmem:[%s2 + $0xb0] sm:$0xff]
  %v419 = vld [vmem:[%s2 + $0xb8] sm:$0xff]
  %v420 = vld [vmem:[%s2 + $0xc0] sm:$0xff]
  %v421 = vld [vmem:[%s2 + $0xc8] sm:$0xff]
  %v422 = vld [vmem:[%s2 + $0xd0] sm:$0xff]
  %v423 = vld [vmem:[%s2 + $0xd8] sm:$0xff]
  %v424 = vld [vmem:[%s2 + $0xe0] sm:$0xff]
  %v425 = vld [vmem:[%s2 + $0xe8] sm:$0xff]
  %v426 = vld [vmem:[%s2 + $0xf0] sm:$0xff]
  %v427 = vld [vmem:[%s2 + $0xf8] sm:$0xff]
  %v428 = vld [vmem:[%s2 + $0x100] sm:$0xff]
  %v429 = vld [vmem:[%s2 + $0x108] sm:$0xff]
  %v430 = vld [vmem:[%s2 + $0x110] sm:$0xff]
  %v431 = vld [vmem:[%s2 + $0x118] sm:$0xff]
  %v432 = vld [vmem:[%s2 + $0x120] sm:$0xff]
  %v433 = vld [vmem:[%s2 + $0x128] sm:$0xff]
  %v434 = vld [vmem:[%s2 + $0x130] sm:$0xff]
  %v435 = vld [vmem:[%s2 + $0x138] sm:$0xff]
  %v436 = vld [vmem:[%s2 + $0x140] sm:$0xff]
  %v437 = vld [vmem:[%s2 + $0x148] sm:$0xff]
  %v438 = vld [vmem:[%s2 + $0x150] sm:$0xff]
  %v439 = vld [vmem:[%s2 + $0x158] sm:$0xff]
  %v440 = vld [vmem:[%s2 + $0x160] sm:$0xff]
  %v441 = vld [vmem:[%s2 + $0x168] sm:$0xff]
  %v442 = vld [vmem:[%s2 + $0x170] sm:$0xff]
  %v443 = vld [vmem:[%s2 + $0x178] sm:$0xff]
  %v444 = vld [vmem:[%s2 + $0x180] sm:$0xff]
  %v445 = vld [vmem:[%s2 + $0x188] sm:$0xff]
  %v446 = vld [vmem:[%s2 + $0x190] sm:$0xff]
  %v447 = vld [vmem:[%s2 + $0x198] sm:$0xff]
  %v448 = vld [vmem:[%s2 + $0x1a0] sm:$0xff]
  %v449 = vld [vmem:[%s2 + $0x1a8] sm:$0xff]
  %v450 = vld [vmem:[%s2 + $0x1b0] sm:$0xff]
  %v451 = vld [vmem:[%s2 + $0x1b8] sm:$0xff]
  %v452 = vld [vmem:[%s2 + $0x1c0] sm:$0xff]
  %v453 = vld [vmem:[%s2 + $0x1c8] sm:$0xff]
  %v454 = vld [vmem:[%s2 + $0x1d0] sm:$0xff]
  %v455 = vld [vmem:[%s2 + $0x1d8] sm:$0xff]
  %456 = vmatpush.msra.mxu0 %v453
  %457 = vmatpush.msra.mxu0 %v450
  %458 = vmatpush.msra.mxu0 %v447
  %459 = vmatpush.msra.mxu0 %v444
  %460 = vmatpush.msra.mxu0 %v441
  %461 = vmatpush.msra.mxu0 %v438
  %462 = vmatpush.msra.mxu0 %v435
  %463 = vmatpush.msra.mxu0 %v432
  %464 = vmatpush.msra.mxu0 %v429
  %465 = vmatpush.msra.mxu0 %v426
  %466 = vmatpush.msra.mxu0 %v423
  %467 = vmatpush.msra.mxu0 %v420
  %468 = vmatpush.msra.mxu0 %v417
  %469 = vmatpush.msra.mxu0 %v414
  %470 = vmatpush.msra.mxu0 %v411
  %471 = vmatpush.msra.mxu0 %v408
  %472 = vmatmul.f32.gmra.mxu0 %v323
  %v473 = vpop.f32.mrf.mxu0
  %v474 = vadd.f32 0.0, %v473
  %475 = vdwg.mxu0
  %476 = vmatpush.msra.mxu0 %v454
  %477 = vmatpush.msra.mxu0 %v451
  %478 = vmatpush.msra.mxu0 %v448
  %479 = vmatpush.msra.mxu0 %v445
  %480 = vmatpush.msra.mxu0 %v442
  %481 = vmatpush.msra.mxu0 %v439
  %482 = vmatpush.msra.mxu0 %v436
  %483 = vmatpush.msra.mxu0 %v433
  %484 = vmatpush.msra.mxu0 %v430
  %485 = vmatpush.msra.mxu0 %v427
  %486 = vmatpush.msra.mxu0 %v424
  %487 = vmatpush.msra.mxu0 %v421
  %488 = vmatpush.msra.mxu0 %v418
  %489 = vmatpush.msra.mxu0 %v415
  %490 = vmatpush.msra.mxu0 %v412
  %491 = vmatpush.msra.mxu0 %v409
  %492 = vmatmul.f32.gmra.mxu0 %v323
  %v493 = vpop.f32.mrf.mxu0
  %v494 = vadd.f32 0.0, %v493
  %495 = vdwg.mxu0
  %496 = vmatpush.msra.mxu0 %v455
  %497 = vmatpush.msra.mxu0 %v452
  %498 = vmatpush.msra.mxu0 %v449
  %499 = vmatpush.msra.mxu0 %v446
  %500 = vmatpush.msra.mxu0 %v443
  %501 = vmatpush.msra.mxu0 %v440
  %502 = vmatpush.msra.mxu0 %v437
  %503 = vmatpush.msra.mxu0 %v434
  %504 = vmatpush.msra.mxu0 %v431
  %505 = vmatpush.msra.mxu0 %v428
  %506 = vmatpush.msra.mxu0 %v425
  %507 = vmatpush.msra.mxu0 %v422
  %508 = vmatpush.msra.mxu0 %v419
  %509 = vmatpush.msra.mxu0 %v416
  %510 = vmatpush.msra.mxu0 %v413
  %511 = vmatpush.msra.mxu0 %v410
  %512 = vmatmul.f32.gmra.mxu0 %v323
  %v513 = vpop.f32.mrf.mxu0
  %v514 = vadd.f32 0.0, %v513
  %515 = vdwg.mxu0
  %v516 = vadd.f32 %v366, %v474
  %v517 = vadd.f32 %v386, %v494
  %v518 = vxor.u32 %v516, 2147483648
  %v519 = vmul.f32 %v518, 1.442695
  %v520 = vpow.pop %v519
  %v521 = vadd.f32 %v520, 1.0
  %v522 = vrcp.pop %v521
  %v523 = vmul.f32 %v521, %v522
  %v524 = vsub.f32 1.0, %v523
  %v525 = vmul.f32 %v522, %v524
  %v526 = vadd.f32 %v522, %v525
  %vm527 = vweird.f32 %v521
  %vm528 = vweird.f32 %v522
  %vm529 = vmor %vm527, %vm528
  %v530 = vsel %vm529, %v522, %v526
  %v531 = vand.u32 2147483647, %v521
  %vm532 = vcmp.eq.f32.partialorder %v531, 8.507059e+37
  %v533 = vand.u32 %v521, 2147483648
  %v534 = vor.u32 1.1754944e-38, %v533
  %v535 = vsel %vm532, %v534, %v530
  %v536 = vmul.f32 1.0, %v535
  %v537 = vxor.u32 %v517, 2147483648
  %v538 = vmul.f32 %v537, 1.442695
  %v539 = vpow.pop %v538
  %v540 = vadd.f32 %v539, 1.0
  %v541 = vrcp.pop %v540
  %v542 = vmul.f32 %v540, %v541
  %v543 = vsub.f32 1.0, %v542
  %v544 = vmul.f32 %v541, %v543
  %v545 = vadd.f32 %v541, %v544
  %vm546 = vweird.f32 %v540
  %vm547 = vweird.f32 %v541
  %vm548 = vmor %vm546, %vm547
  %v549 = vsel %vm548, %v541, %v545
  %v550 = vand.u32 2147483647, %v540
  %vm551 = vcmp.eq.f32.partialorder %v550, 8.507059e+37
  %v552 = vand.u32 %v540, 2147483648
  %v553 = vor.u32 1.1754944e-38, %v552
  %v554 = vsel %vm551, %v553, %v549
  %v555 = vmul.f32 1.0, %v554
  %v556 = vld [vmem:[%s4 + $0x4] sm:$0x1]
  %v558 = vperm.slane %v556, 0
  %v560 = vadd.f32 %v514, %v558
  %v561 = vmul.f32 %v536, %v560
  %v562 = vadd.f32 %v406, %v561
  %v563 = vtanh.pop %v562
  %v564 = vsub.f32 1.0, %v555
  %v565 = vmul.f32 %v564, %v563
  %v566 = vmul.f32 %v555, %v323
  %v567 = vadd.f32 %v565, %v566
  %v568 = vld [vmem:[%s3] sm:$0xff]
  %v569 = vld [vmem:[%s3 + $0x8] sm:$0xff]
  %v570 = vld [vmem:[%s3 + $0x10] sm:$0xff]
  %v571 = vld [vmem:[%s3 + $0x18] sm:$0xff]
  %v572 = vld [vmem:[%s3 + $0x20] sm:$0xff]
  %v573 = vld [vmem:[%s3 + $0x28] sm:$0xff]
  %v574 = vld [vmem:[%s3 + $0x30] sm:$0xff]
  %v575 = vld [vmem:[%s3 + $0x38] sm:$0xff]
  %v576 = vld [vmem:[%s3 + $0x40] sm:$0xff]
  %v577 = vld [vmem:[%s3 + $0x48] sm:$0xff]
  %v578 = vld [vmem:[%s3 + $0x50] sm:$0xff]
  %v579 = vld [vmem:[%s3 + $0x58] sm:$0xff]
  %v580 = vld [vmem:[%s3 + $0x60] sm:$0xff]
  %v581 = vld [vmem:[%s3 + $0x68] sm:$0xff]
  %v582 = vld [vmem:[%s3 + $0x70] sm:$0xff]
  %v583 = vld [vmem:[%s3 + $0x78] sm:$0xff]
  %v584 = vld [vmem:[%s4 + $0x5] sm:$0x1]
  %v586 = vperm.slane %v584, 0
  %588 = vmatpush.msra.mxu0 %v583
  %589 = vmatpush.msra.mxu0 %v582
  %590 = vmatpush.msra.mxu0 %v581
  %591 = vmatpush.msra.mxu0 %v580
  %592 = vmatpush.msra.mxu0 %v579
  %593 = vmatpush.msra.mxu0 %v578
  %594 = vmatpush.msra.mxu0 %v577
  %595 = vmatpush.msra.mxu0 %v576
  %596 = vmatpush.msra.mxu0 %v575
  %597 = vmatpush.msra.mxu0 %v574
  %598 = vmatpush.msra.mxu0 %v573
  %599 = vmatpush.msra.mxu0 %v572
  %600 = vmatpush.msra.mxu0 %v571
  %601 = vmatpush.msra.mxu0 %v570
  %602 = vmatpush.msra.mxu0 %v569
  %603 = vmatpush.msra.mxu0 %v568
  %604 = vmatmul.f32.gmra.mxu0 %v567
  %v605 = vpop.f32.mrf.mxu0
  %v606 = vadd.f32 %v586, %v605
  %607 = vdwg.mxu0
  %608 = vst [vmem:[%s6] sm:$0xff] %v567
  %609 = vst [vmem:[%s6 + $0x8] sm:$0xff] %v606
  // Predicated region
  $region26: #{_dqn_forward_jit.1} parent=0 // pred_check
    _
  $region27: #{_dqn_forward_jit.1} parent=0 // pred_check_branch
    %611 = sbr.rel (0) target = $region29
  $region28: #{_dqn_forward_jit.1} parent=0 // pred_region
    _
  $region29: #{_dqn_forward_jit.1} parent=0 // pred_fallthru
    _
  // Predicated region
  $region30: #{_dqn_forward_jit.1} parent=0 // pred_check
    _
  $region31: #{_dqn_forward_jit.1} parent=0 // pred_check_branch
    %613 = sbr.rel (0) target = $region33
  $region32: #{_dqn_forward_jit.1} parent=0 // pred_region
    _
  $region33: #{_dqn_forward_jit.1} parent=0 // pred_fallthru
    _

</llo_original>
